<compile_context>
chip_gen: v6e
topology: v6e:2x2x1
jax: 0.10.0
libtpu: 0.0.40
codegen_flags: <defaults>
</compile_context>

<pallas_src>
import jax
import jax.numpy as jnp
from jax.experimental import pallas as pl
from jax.experimental.pallas import tpu as pltpu

_TARGET_TILE_BYTES = 2 * 1024 * 1024  # ~2 MiB per pipeline buffer


def _make_kernel(num_s_tiles: int, rem: int):
    """Kernel copying a (1, TILE_S, d) slab into a (1, NB_TILE, BL, d) slab.

    The last sequence tile (program_id(1) == num_s_tiles - 1) is a partial
    input block: only `rem` rows are valid; the rest are zero-filled so the
    output matches pad+reshape semantics.
    """

    def kernel(x_ref, o_ref):
        last = num_s_tiles - 1

        @pl.when(pl.program_id(1) != last)
        def _():
            o_ref[...] = x_ref[...].reshape(o_ref.shape)

        @pl.when(pl.program_id(1) == last)
        def _():
            x = x_ref[...]
            row = jax.lax.broadcasted_iota(jnp.int32, x.shape, dimension=1)
            x = jnp.where(row < rem, x, jnp.zeros_like(x))
            o_ref[...] = x.reshape(o_ref.shape)

    return kernel


def seq_to_blocks(x: jax.Array, block_len: int, *, nb_tile: int | None = None) -> jax.Array:
    """Pallas equivalent of SeqToBlocks.forward.

    Args:
        x: (B, S, d) array.
        block_len: block length BL (multiple of 8 for clean TPU sublane tiling).
        nb_tile: optional override for blocks-per-grid-step (mainly for tests).

    Returns:
        (B, NB, BL, d) array, NB = ceil(S / BL), zero-padded on the seq axis.
    """
    B, S, d = x.shape
    BL = block_len
    assert BL % 8 == 0, f"block_len must be a multiple of 8 on TPU, got {BL}"
    NB = pl.cdiv(S, BL)

    # Fast path: no padding needed -> metadata-only reshape, no kernel.
    if S % BL == 0:
        return x.reshape(B, NB, BL, d)

    itemsize = jnp.dtype(x.dtype).itemsize

    # Blocks per grid step: aim for ~2 MiB tiles (big enough to amortize the
    # ~0.35 us per-step pipeline overhead, small enough for every generation's
    # default scoped VMEM with double buffering of input + output).
    if nb_tile is None:
        nb_tile = max(1, min(_TARGET_TILE_BYTES // (BL * d * itemsize), NB))
    NB_TILE = int(nb_tile)
    TILE_S = NB_TILE * BL                 # multiple of 8 since BL % 8 == 0
    num_s_tiles = pl.cdiv(NB, NB_TILE)

    # Static remainder: valid sequence rows inside the last TILE_S slab.
    rem = S - (num_s_tiles - 1) * TILE_S  # 1 <= rem < TILE_S here

    bytes_accessed = B * S * d * itemsize + B * NB * BL * d * itemsize

    return pl.pallas_call(
        _make_kernel(num_s_tiles, rem),
        out_shape=jax.ShapeDtypeStruct((B, NB, BL, d), x.dtype),
        grid_spec=pltpu.PrefetchScalarGridSpec(
            num_scalar_prefetch=0,
            grid=(B, num_s_tiles),
            in_specs=[
                # Reads the original (unpadded) x. The last slab is a partial
                # block; its OOB rows are unspecified and get zeroed in-kernel.
                pl.BlockSpec((1, TILE_S, d), lambda b, t: (b, t, 0)),
            ],
            out_specs=pl.BlockSpec(
                (1, NB_TILE, BL, d), lambda b, t: (b, t, 0, 0)
            ),
        ),
        compiler_params=pltpu.CompilerParams(
            dimension_semantics=("parallel", "parallel"),
        ),
        cost_estimate=pl.CostEstimate(
            flops=0, transcendentals=0, bytes_accessed=bytes_accessed
        ),
    )(x)


def _reference(x: jax.Array, block_len: int) -> jax.Array:
    B, S, d = x.shape
    NB = -(-S // block_len)
    x_pad = jnp.pad(x, ((0, 0), (0, NB * block_len - S), (0, 0)))
    return x_pad.reshape(B, NB, block_len, d)


if __name__ == "__main__":
    key = jax.random.PRNGKey(0)
    B, d, BL = 2, 128, 8

    # Case 1: unaligned sequence (S=20 -> NB=3, exercises in-kernel zero tail),
    # auto tile size (single grid step along the sequence).
    x1 = jax.random.normal(key, (B, 20, d), dtype=jnp.float32)
    out1 = jax.block_until_ready(seq_to_blocks(x1, BL))
    ref1 = _reference(x1, BL)
    assert out1.shape == ref1.shape and out1.dtype == x1.dtype
    assert jnp.array_equal(out1, ref1), "mismatch vs reference (padded, auto tile)"

    # Case 2: same input, forced small tile -> multi-step grid, exercises both
    # the plain-copy branch and the last-tile masking branch.
    out2 = jax.block_until_ready(seq_to_blocks(x1, BL, nb_tile=1))
    assert jnp.array_equal(out2, ref1), "mismatch vs reference (padded, nb_tile=1)"

    # Case 3: aligned sequence -> fast path (pure reshape, no kernel).
    x3 = jax.random.normal(jax.random.PRNGKey(0), (B, 16, d), dtype=jnp.float32)
    out3 = jax.block_until_ready(seq_to_blocks(x3, BL))
    assert jnp.array_equal(out3, _reference(x3, BL)), "mismatch vs reference (aligned)"

    print("KERNEL_OK")
</pallas_src>

<mosaic_0001>
module attributes {stable_mosaic.version = 11 : i64} {
  func.func @kernel(%arg0: i32, %arg1: i32, %arg2: memref<1x24x128xf32, #tpu.memory_space<vmem>>, %arg3: memref<1x3x8x128xf32, #tpu.memory_space<vmem>>) attributes {dimension_semantics = [#tpu.dimension_semantics<parallel>, #tpu.dimension_semantics<parallel>], iteration_bounds = array<i64: 2, 1>, scalar_prefetch = 0 : i64, scratch_operands = 0 : i64, tpu.core_type = #tpu.core_type<tc>, window_params = [{transform_indices = @transform_0, window_bounds = array<i64: 1, 24, 128>}, {transform_indices = @transform_1, window_bounds = array<i64: 1, 3, 8, 128>}]} {
    %c0_i32 = arith.constant 0 : i32
    %0 = arith.cmpi ne, %arg1, %c0_i32 : i32
    %1 = arith.extui %0 : i1 to i32
    %c0_i32_0 = arith.constant 0 : i32
    %2 = arith.cmpi ne, %1, %c0_i32_0 : i32
    scf.if %2 {
      %c0 = arith.constant 0 : index
      %c0_3 = arith.constant 0 : index
      %c0_4 = arith.constant 0 : index
      %6 = vector.load %arg2[%c0, %c0_3, %c0_4] : memref<1x24x128xf32, #tpu.memory_space<vmem>>, vector<1x24x128xf32>
      %7 = vector.shape_cast %6 : vector<1x24x128xf32> to vector<1x3x8x128xf32>
      %c0_5 = arith.constant 0 : index
      %c0_6 = arith.constant 0 : index
      %c0_7 = arith.constant 0 : index
      %c0_8 = arith.constant 0 : index
      %8 = vector.load %arg3[%c0_5, %c0_6, %c0_7, %c0_8] : memref<1x3x8x128xf32, #tpu.memory_space<vmem>>, vector<1x3x8x128xf32>
      tpu.vector_store %arg3[%c0_5, %c0_6, %c0_7, %c0_8], %7 {strides = array<i32>} : memref<1x3x8x128xf32, #tpu.memory_space<vmem>>, vector<1x3x8x128xf32>,
    } else {
    }
    %c0_i32_1 = arith.constant 0 : i32
    %3 = arith.cmpi eq, %arg1, %c0_i32_1 : i32
    %4 = arith.extui %3 : i1 to i32
    %c0_i32_2 = arith.constant 0 : i32
    %5 = arith.cmpi ne, %4, %c0_i32_2 : i32
    scf.if %5 {
      %c0 = arith.constant 0 : index
      %c0_3 = arith.constant 0 : index
      %c0_4 = arith.constant 0 : index
      %6 = vector.load %arg2[%c0, %c0_3, %c0_4] : memref<1x24x128xf32, #tpu.memory_space<vmem>>, vector<1x24x128xf32>
      %7 = tpu.iota {dimensions = array<i32: 1>} : vector<1x24x128xi32>
      %c20_i32 = arith.constant 20 : i32
      %8 = vector.broadcast %c20_i32 : i32 to vector<1x24x128xi32>
      %9 = arith.cmpi slt, %7, %8 : vector<1x24x128xi32>
      %cst = arith.constant 0.000000e+00 : f32
      %10 = vector.broadcast %cst : f32 to vector<1x24x128xf32>
      %11 = arith.select %9, %6, %10 : vector<1x24x128xi1>, vector<1x24x128xf32>
      %12 = vector.shape_cast %11 : vector<1x24x128xf32> to vector<1x3x8x128xf32>
      %c0_5 = arith.constant 0 : index
      %c0_6 = arith.constant 0 : index
      %c0_7 = arith.constant 0 : index
      %c0_8 = arith.constant 0 : index
      %13 = vector.load %arg3[%c0_5, %c0_6, %c0_7, %c0_8] : memref<1x3x8x128xf32, #tpu.memory_space<vmem>>, vector<1x3x8x128xf32>
      tpu.vector_store %arg3[%c0_5, %c0_6, %c0_7, %c0_8], %12 {strides = array<i32>} : memref<1x3x8x128xf32, #tpu.memory_space<vmem>>, vector<1x3x8x128xf32>,
    } else {
    }
    return
  }
  func.func @transform_0(%arg0: i32, %arg1: i32) -> (i32, i32, i32) {
    %c0_i32 = arith.constant 0 : i32
    %c0_i32_0 = arith.constant 0 : i32
    return %arg0, %arg1, %c0_i32 : i32, i32, i32
  }
  func.func @transform_1(%arg0: i32, %arg1: i32) -> (i32, i32, i32, i32) {
    %c0_i32 = arith.constant 0 : i32
    %c0_i32_0 = arith.constant 0 : i32
    %c0_i32_1 = arith.constant 0 : i32
    return %arg0, %arg1, %c0_i32, %c0_i32_0 : i32, i32, i32, i32
  }
}

</mosaic_0001>

<llo_original>
// kernel: tpu_custom_call.1
$region0: #{tpu_custom_call.1}
  #allocation0 [shape = 'u32[]', space=smem, size = 0x4, offset = 0x4, fixed_abs, tag = 'smem constant byte address 0x4 - core index']
  #allocation1 [shape = 'u32[144,128]{1,0:T(1,128)}', space=vmem, size = 0x12000, scoped, tag = 'internal scratch']
  %s0 = inlined_call_operand.vmem [shape: f32[2,20,128], index: 0, kind: input, shape index: {}]
  %s1 = inlined_call_operand.hbm [shape: f32[2,3,8,128], index: 1, kind: output, shape index: {}]
  %s2 = sld [smem:[#allocation0]]
  $region45: #{tpu_custom_call.1} parent=0
    _
  %s4 = ssub.s32 1, %s2
  %s5 = scalar_select 0, %s4, %s2
  $region1: #{tpu_custom_call.1} parent=0
    #allocation2 [shape = 'u8[24576]{0}', space=vmem, size = 0x6000, scoped, tag = 'output window, operand 0']
    #allocation3 [shape = 's32[2]{0}', space=sflag, size = 0x8, scoped, tag = 'scoped memory for tpu_custom_call.1']
    %6 = vsyncpa [#allocation3], 0
    %s7 = scalar_lea.sflag [#allocation3], 1
    %8 = vsyncpa %s7, 0
    loop: start=0, step=1, limit=4
    $region2: #{tpu_custom_call.1} parent=1 // loop_pre_header
      _
    $region3: #{tpu_custom_call.1} parent=1 // loop_header
      %s10 = sphi 0, %s14
      %p11 = scmp.ge.s32.totalorder %s10, 4
      %s17 = sphi 0, %s29
      %s18 = sphi 0, %s25
      %s19 = sphi 0, %s17
      %s20 = sphi 0, %s18
      %s21 = sphi 0, %s19
      %s22 = sphi 0, %s20
      %s34 = sphi 0, %s36
      %s37 = sphi 0, %s34
      %s38 = sphi 0, %s37
      %s54 = sphi 0, %s38
      %s62 = sphi 0, %s64
      %s65 = sphi 0, %s62
      %s66 = sphi 0, %s65
      %s82 = sphi 0, %s66
    $region4: #{tpu_custom_call.1} parent=1 // loop_header_branch
      %13 = sbr.rel (%p11) target = $region8
    $region5: #{tpu_custom_call.1} parent=1 // loop_body
      %s15 = ssub.s32 %s10, 1
      %s16 = ssub.s32 %s10, 2
      %s23 = sadd.s32 1, %s18
      %p24 = scmp.ge.s32.totalorder %s23, 1
      %s25 = scalar_select %p24, 0, %s23
      %s26 = sadd.s32 1, %s17
      %s27 = scalar_select %p24, %s26, %s17
      %p28 = scmp.ge.s32.totalorder %s27, 2
      %s29 = scalar_select %p28, 0, %s27
      %s30 = ssub.s32 %s17, %s29
      %s31 = ssub.s32 %s18, %s25
      %s32 = sor.u32 %s30, %s31
      %p33 = scmp.eq.s32.totalorder %s32, 0
      %s35 = sadd.s32 %s34, 1
      %s36 = scalar_select %p33, %s34, %s35
      %p39 = pneg %p33
      %p40 = scmp.eq.s32.totalorder %s10, 1
      %p41 = por %p39, %p40
      %p42 = scmp.ne.s32.totalorder %s34, %s37
      %p43 = scmp.eq.s32.totalorder %s10, 0
      %p44 = por %p42, %p43
      %p45 = scmp.ne.s32.totalorder %s34, %s37
      %p46 = scmp.eq.s32.totalorder %s15, 1
      %p47 = por %p45, %p46
      %p48 = scmp.ne.s32.totalorder %s37, %s38
      %p49 = scmp.eq.s32.totalorder %s15, 0
      %p50 = por %p48, %p49
      %p51 = scmp.ne.s32.totalorder %s37, %s38
      %p52 = scmp.eq.s32.totalorder %s16, 1
      %p53 = por %p51, %p52
      %p55 = scmp.ne.s32.totalorder %s38, %s54
      %p56 = scmp.eq.s32.totalorder %s16, 0
      %p57 = por %p55, %p56
      %s58 = ssub.s32 %s17, %s29
      %s59 = ssub.s32 %s18, %s25
      %s60 = sor.u32 %s58, %s59
      %p61 = scmp.eq.s32.totalorder %s60, 0
      %s63 = sadd.s32 %s62, 1
      %s64 = scalar_select %p61, %s62, %s63
      %p67 = pneg %p61
      %p68 = scmp.eq.s32.totalorder %s10, 1
      %p69 = por %p67, %p68
      %p70 = scmp.ne.s32.totalorder %s62, %s65
      %p71 = scmp.eq.s32.totalorder %s10, 0
      %p72 = por %p70, %p71
      %p73 = scmp.ne.s32.totalorder %s62, %s65
      %p74 = scmp.eq.s32.totalorder %s15, 1
      %p75 = por %p73, %p74
      %p76 = scmp.ne.s32.totalorder %s65, %s66
      %p77 = scmp.eq.s32.totalorder %s15, 0
      %p78 = por %p76, %p77
      %p79 = scmp.ne.s32.totalorder %s65, %s66
      %p80 = scmp.eq.s32.totalorder %s16, 1
      %p81 = por %p79, %p80
      %p83 = scmp.ne.s32.totalorder %s66, %s82
      %p84 = scmp.eq.s32.totalorder %s16, 0
      %p85 = por %p83, %p84
      %p86 = scmp.le.s32.totalorder 1, %s10
      %p87 = scmp.lt.s32.totalorder %s10, 3
      %p88 = pnand %p86, %p87
      %p89 = pneg %p88
      // Predicated region
      $region9: #{tpu_custom_call.1} parent=5 // pred_check
        _
      $region10: #{tpu_custom_call.1} parent=5 // pred_check_branch
        %91 = sbr.rel (%p88) target = $region12
      $region11: #{tpu_custom_call.1} parent=5 // pred_region
        %s92 = ssub.s32 %s10, 1
      $region12: #{tpu_custom_call.1} parent=5 // pred_fallthru
        _
      %p93 = scmp.lt.s32.totalorder %s10, 2
      // Predicated region
      $region13: #{tpu_custom_call.1} parent=5 // pred_check
        %p94 = pneg %p93
      $region14: #{tpu_custom_call.1} parent=5 // pred_check_branch
        %96 = sbr.rel (%p94) target = $region16
      $region15: #{tpu_custom_call.1} parent=5 // pred_region
        // Predicated region
        $region17: #{tpu_custom_call.1} parent=15 // pred_check
          %p97 = pneg %p44
        $region18: #{tpu_custom_call.1} parent=15 // pred_check_branch
          %99 = sbr.rel (%p97) target = $region20
        $region19: #{tpu_custom_call.1} parent=15 // pred_region
          %s100 = smul.u32 3, %s18
          %p101 = scmp.lt.s32.totalorder %s17, 1
          %s102 = scalar_select %p101, %s17, 1
          %p103 = scmp.lt.s32.totalorder %s100, 2
          %s104 = scalar_select %p103, %s100, 2
          %s105 = smul.addr %s102, 3
          %s106 = sadd.s32 %s104, %s105
          %s107 = smul.addr %s106, 8
          %s108 = scalar_lea.vmem %s0, %s107
          %s109 = smul.u32 3, %s18
        $region20: #{tpu_custom_call.1} parent=15 // pred_fallthru
          _
      $region16: #{tpu_custom_call.1} parent=5 // pred_fallthru
        _
      %p110 = scmp.le.s32.totalorder 1, %s10
      %p111 = scmp.lt.s32.totalorder %s10, 3
      %p112 = pnand %p110, %p111
      %p113 = pneg %p112
      // Predicated region
      $region21: #{tpu_custom_call.1} parent=5 // pred_check
        _
      $region22: #{tpu_custom_call.1} parent=5 // pred_check_branch
        %115 = sbr.rel (%p112) target = $region24
      $region23: #{tpu_custom_call.1} parent=5 // pred_region
        %s116 = ssub.s32 %s10, 1
        %s117 = smul.u32 3, %s20
        %p118 = scmp.lt.s32.totalorder %s19, 1
        %s119 = scalar_select %p118, %s19, 1
        %p120 = scmp.lt.s32.totalorder %s117, 2
        %s121 = scalar_select %p120, %s117, 2
        %s122 = smul.addr %s119, 3
        %s123 = sadd.s32 %s121, %s122
        %s124 = smul.addr %s123, 8
        %s125 = scalar_lea.vmem %s0, %s124
        %p126 = pneg %p50
        %p127 = pneg %p47
        %p128 = pneg %p78
        %p129 = pneg %p75
        %s130 = sand.u32 %s65, 1
        %s131 = scalar_lea.sflag [#allocation3], %s130
        %s132 = sand.u32 %s65, 1
        %s133 = smul.addr %s132, 24
        %s134 = scalar_lea.vmem [#allocation2], %s133
        %s135 = smul.u32 3, %s20
        %p136 = scmp.lt.s32.totalorder %s19, 1
        %s137 = scalar_select %p136, %s19, 1
        %p138 = scmp.lt.s32.totalorder %s135, 2
        %s139 = scalar_select %p138, %s135, 2
        %s140 = smul.addr %s137, 3
        %s141 = sadd.s32 %s139, %s140
        %s142 = smul.addr %s141, 8
        %s143 = scalar_lea.vmem %s0, %s142
        %s144 = smul.u32 3, %s20
        %s145 = smul.u32 3, %s20
        %p146 = scmp.ne.s32.totalorder %s20, 0
        // Predicated region
        $region25: #{tpu_custom_call.1} parent=23 // pred_check
          %p147 = pneg %p146
        $region26: #{tpu_custom_call.1} parent=23 // pred_check_branch
          %149 = sbr.rel (%p147) target = $region28
        $region27: #{tpu_custom_call.1} parent=23 // pred_region
          %v150 = vld [vmem:[%s143] sm:$0xff]
          %v151 = vld [vmem:[%s143 + $0x8] sm:$0xff]
          %v152 = vld [vmem:[%s143 + $0x10] sm:$0xff]
          %153 = vst [vmem:[%s134] sm:$0xff] %v150
          %154 = vst [vmem:[%s134 + $0x8] sm:$0xff] %v151
          %155 = vst [vmem:[%s134 + $0x10] sm:$0xff] %v152
        $region28: #{tpu_custom_call.1} parent=23 // pred_fallthru
          _
        %p156 = scmp.eq.s32.totalorder %s20, 0
        // Predicated region
        $region29: #{tpu_custom_call.1} parent=23 // pred_check
          %p157 = pneg %p156
        $region30: #{tpu_custom_call.1} parent=23 // pred_check_branch
          %159 = sbr.rel (%p157) target = $region32
        $region31: #{tpu_custom_call.1} parent=23 // pred_region
          %v160 = vld [vmem:[%s143] sm:$0xff]
          %v161 = vld [vmem:[%s143 + $0x8] sm:$0xff]
          %v162 = vld [vmem:[%s143 + $0x10] sm:$0xff]
          %v163 = vlaneseq
          %v164 = vshrl.u32 %v163, 7
          %v165 = vadd.s32 %v164, 8
          %v166 = vadd.s32 %v164, 16
          %vm167 = vcmp.lt.s32.totalorder %v164, 20
          %vm168 = vcmp.lt.s32.totalorder %v165, 20
          %vm169 = vcmp.lt.s32.totalorder %v166, 20
          %v170 = vsel %vm167, %v160, 0.0
          %v171 = vsel %vm168, %v161, 0.0
          %v172 = vsel %vm169, %v162, 0.0
          %173 = vst [vmem:[%s134] sm:$0xff] %v170
          %174 = vst [vmem:[%s134 + $0x8] sm:$0xff] %v171
          %175 = vst [vmem:[%s134 + $0x10] sm:$0xff] %v172
        $region32: #{tpu_custom_call.1} parent=23 // pred_fallthru
          _
        %s176 = sand.u32 %s65, 1
        %s177 = scalar_lea.sflag [#allocation3], %s176
        %s178 = sand.u32 %s65, 1
        %s179 = smul.addr %s178, 24
        %s180 = scalar_lea.vmem [#allocation2], %s179
        // Predicated region
        $region33: #{tpu_custom_call.1} parent=23 // pred_check
          %p181 = pneg %p75
        $region34: #{tpu_custom_call.1} parent=23 // pred_check_branch
          %183 = sbr.rel (%p181) target = $region36
        $region35: #{tpu_custom_call.1} parent=23 // pred_region
          %s184 = smul.u32 3, %s20
          %s186 = ssub.s32 384, 384
          %187 = vsyncadd %s177, %s186
          %s188 = smul.addr %s19, 3
          %s189 = sadd.s32 %s184, %s188
          %s190 = smul.addr %s189, 128
          %s191 = scalar_lea.hbm %s1, %s190
          %s192 = sshll.u32 %s180, 4
          %s193 = int_to_ptr.vmem [resolvable:$true] %s192
          %198 = dma.vmem_to_hbm [thread:$0]  %s193, 384, %s191, %s177, 128, 128, 8
        $region36: #{tpu_custom_call.1} parent=23 // pred_fallthru
          _
      $region24: #{tpu_custom_call.1} parent=5 // pred_fallthru
        _
      %p199 = scmp.le.s32.totalorder 2, %s10
      // Predicated region
      $region37: #{tpu_custom_call.1} parent=5 // pred_check
        %p200 = pneg %p199
      $region38: #{tpu_custom_call.1} parent=5 // pred_check_branch
        %202 = sbr.rel (%p200) target = $region40
      $region39: #{tpu_custom_call.1} parent=5 // pred_region
        %s203 = ssub.s32 %s10, 2
        // Predicated region
        $region41: #{tpu_custom_call.1} parent=39 // pred_check
          %p204 = pneg %p81
        $region42: #{tpu_custom_call.1} parent=39 // pred_check_branch
          %206 = sbr.rel (%p204) target = $region44
        $region43: #{tpu_custom_call.1} parent=39 // pred_region
          %s207 = sand.u32 %s66, 1
          %s208 = scalar_lea.sflag [#allocation3], %s207
          %s209 = sand.u32 %s66, 1
          %s210 = smul.addr %s209, 24
          %s211 = scalar_lea.vmem [#allocation2], %s210
          %212 = dma.done %s208, 384
        $region44: #{tpu_custom_call.1} parent=39 // pred_fallthru
          _
      $region40: #{tpu_custom_call.1} parent=5 // pred_fallthru
        _
    $region6: #{tpu_custom_call.1} parent=1 // loop_footer
      %s14 = sadd.s32 1, %s10
    $region7: #{tpu_custom_call.1} parent=1 // loop_footer_branch
      %9 = sbr.rel target = $region3
    $region8: #{tpu_custom_call.1} parent=1 // loop_exit
      _
    %213 = vsyncpa [#allocation3], 1
    %s214 = scalar_lea.sflag [#allocation3], 1
    %215 = vsyncpa %s214, 1

</llo_original>
